<compile_context>
chip_gen: v7x
topology: tpu7x:2x2x1
jax: 0.10.0
libtpu: 0.0.40
codegen_flags: <defaults>
</compile_context>

<pallas_src>
import jax
import jax.numpy as jnp
from jax.experimental import pallas as pl
from jax.experimental.pallas import tpu as pltpu


_CHUNK_MIN_BYTES = 2 * 1024 * 1024   # below this, one DMA is cheapest
_MAX_CHUNKS = 4                      # a few concurrent HBM->HBM streams


def _single_copy_kernel(x_hbm, o_hbm, sem):
    # One whole-array HBM->HBM DMA.
    cp = pltpu.make_async_copy(x_hbm, o_hbm, sem)
    cp.start()
    cp.wait()


def _make_chunked_copy_kernel(bounds):
    # `bounds` are static Python ints (len = n_chunks + 1) splitting the leading axis.
    n_chunks = len(bounds) - 1

    def kernel(x_hbm, o_hbm, sems):
        copies = []
        for c in range(n_chunks):
            lo = bounds[c]
            sz = bounds[c + 1] - bounds[c]
            cp = pltpu.make_async_copy(
                x_hbm.at[pl.ds(lo, sz)], o_hbm.at[pl.ds(lo, sz)], sems.at[c]
            )
            cp.start()
            copies.append(cp)
        for cp in copies:
            cp.wait()

    return kernel


def identity_forward(x):
    """Pallas identity: returns a tensor equal to x (same shape, same dtype).

    Note: a true identity could simply `return x`; the Pallas copy kernel is kept
    to match the module-as-kernel spec, implemented as a direct HBM->HBM DMA.
    """
    if x.size == 0 or x.ndim == 0:
        # Degenerate shapes: nothing worth launching a kernel for.
        return x

    nbytes = x.size * x.dtype.itemsize
    lead = x.shape[0]

    if nbytes >= _CHUNK_MIN_BYTES and lead >= 2:
        # A few concurrent DMA streams over static, even-ish leading-axis chunks.
        n_chunks = min(_MAX_CHUNKS, lead)
        bounds = tuple((c * lead) // n_chunks for c in range(n_chunks + 1))
        kernel = _make_chunked_copy_kernel(bounds)
        scratch = [pltpu.SemaphoreType.DMA((n_chunks,))]
    else:
        kernel = _single_copy_kernel
        scratch = [pltpu.SemaphoreType.DMA]

    return pl.pallas_call(
        kernel,
        out_shape=jax.ShapeDtypeStruct(x.shape, x.dtype),
        in_specs=[pl.BlockSpec(memory_space=pl.ANY)],
        out_specs=pl.BlockSpec(memory_space=pl.ANY),
        scratch_shapes=scratch,
        cost_estimate=pl.CostEstimate(
            flops=0, transcendentals=0, bytes_accessed=2 * nbytes
        ),
    )(x)


if __name__ == "__main__":
    key = jax.random.PRNGKey(0)

    # Small NCHW activation consistent with a LeNet intermediate: batch=2, channels=4, 16x16.
    x = jax.random.normal(key, (2, 4, 16, 16), dtype=jnp.float32)
    y = identity_forward(x)
    jax.block_until_ready(y)
    assert y.shape == x.shape, (y.shape, x.shape)
    assert y.dtype == x.dtype, (y.dtype, x.dtype)
    assert bool(jnp.all(y == x)), "Identity output mismatch (single-DMA path)"

    # Secondary sanity check: 2 MiB tensor exercises the chunked concurrent-DMA path.
    x2 = jax.random.normal(jax.random.PRNGKey(1), (256, 2048), dtype=jnp.float32)
    y2 = identity_forward(x2)
    jax.block_until_ready(y2)
    assert y2.shape == x2.shape and y2.dtype == x2.dtype
    assert bool(jnp.all(y2 == x2)), "Identity output mismatch (chunked-DMA path)"

    print("KERNEL_OK")
</pallas_src>

<mosaic_0001>
module attributes {stable_mosaic.version = 11 : i64} {
  func.func @_single_copy_kernel(%arg0: memref<2x4x16x16xf32, #tpu.memory_space<any>>, %arg1: memref<2x4x16x16xf32, #tpu.memory_space<any>>, %arg2: memref<!tpu.dma_semaphore, #tpu.memory_space<semaphore_mem>>) attributes {dimension_semantics = [], scalar_prefetch = 0 : i64, scratch_operands = 1 : i64, tpu.core_type = #tpu.core_type<tc>} {
    tpu.enqueue_dma source(%arg0 : memref<2x4x16x16xf32, #tpu.memory_space<any>>) target(%arg1 : memref<2x4x16x16xf32, #tpu.memory_space<any>>) target_semaphore(%arg2 : memref<!tpu.dma_semaphore, #tpu.memory_space<semaphore_mem>>)
    tpu.wait_dma2 semaphore(%arg2 : memref<!tpu.dma_semaphore, #tpu.memory_space<semaphore_mem>>) src(%arg0 : memref<2x4x16x16xf32, #tpu.memory_space<any>>) dst(%arg1 : memref<2x4x16x16xf32, #tpu.memory_space<any>>)
    return
  }
}

</mosaic_0001>

<llo_original>
// kernel: tpu_custom_call.1
$region0: #{tpu_custom_call.1}
  #allocation0 [shape = 'u32[]', space=smem, size = 0x4, offset = 0x4, fixed_abs, tag = 'smem constant byte address 0x4 - core index']
  #allocation1 [shape = 'u32[144,128]{1,0:T(1,128)}', space=vmem, size = 0x12000, scoped, tag = 'internal scratch']
  #allocation2 [shape = 's32[1]{0}', space=sflag, size = 0x4, scoped, tag = 'scratch operand']
  #allocation3 [shape = 's32[]', space=sflag, size = 0x4, offset = 0, fixed_abs, tag = 'sflag constant byte address 0x0 - dummy sync flag']
  #allocation4 [shape = 'u32[0]{0}', space=smem, size = 0, offset = 0, fixed_abs, tag = 'smem constant byte address 0x0 - null']
  %s0 = inlined_call_operand.hbm [shape: f32[2,4,16,16], index: 0, kind: input, shape index: {}]
  %s1 = inlined_call_operand.hbm [shape: f32[2,4,16,16], index: 1, kind: output, shape index: {}]
  %s2 = sld [smem:[#allocation0]]
  $region2: #{tpu_custom_call.1} parent=0
    _
  %s4 = ssub.s32 1, %s2
  %s5 = scalar_select 0, %s4, %s2
  %s7 = sshll.u32 1, 14
  %s8 = sxor.u32 4294967295, %s7
  %s11 = sshll.u32 3, 24
  %s12 = sxor.u32 4294967295, %s11
  %s13 = sand.u32 0, %s12
  %s15 = sor.u32 %s13, 0
  %18 = dma.general %s0, 2048, %s1, [#allocation2], [#allocation3], [#allocation4], %s15, 0
  %s19 = smul.u32 2, 4
  %s20 = smul.u32 %s19, 16
  %s21 = smul.u32 %s20, 1
  %s22 = sshll.u32 %s21, 4
  %23 = dma.done [#allocation2], %s22
  %24 = vsyncmov [#allocation2]
  %s25 = vpop.sfrf %24
  %p26 = scmp.eq.s32.totalorder %s25, 0
  %p27 = pneg %p26
  %29 = shalt.err (%p27)

</llo_original>
